<compile_context>
chip_gen: v7x
topology: tpu7x:2x2x1
jax: 0.10.0
libtpu: 0.0.40
codegen_flags: <defaults>
</compile_context>

<pallas_src>
import functools

import numpy as np
import jax
import jax.numpy as jnp
from jax.experimental import pallas as pl
from jax.experimental.pallas import tpu as pltpu


# Safe on every generation: < v7x's 64 MiB physical VMEM, leaves headroom.
_VMEM_LIMIT_BYTES = 48 * 1024 * 1024


@functools.lru_cache(maxsize=None)
def _interp_matrix_np(in_size: int, mode: str) -> np.ndarray:
    """PyTorch F.interpolate(scale_factor=2, mode=mode) along one axis as a
    dense [2*in_size, in_size] matrix (KB-sized; host-cached per (size, mode)).
    mode in {'nearest', 'bilinear'}; bilinear uses align_corners=False."""
    out_size = 2 * in_size
    U = np.zeros((out_size, in_size), dtype=np.float32)
    p = np.arange(out_size)
    if mode == "nearest":
        U[p, p // 2] = 1.0
    elif mode == "bilinear":
        src = (p + 0.5) / 2.0 - 0.5
        src = np.maximum(src, 0.0)                      # PyTorch clamps to 0
        i0 = np.minimum(np.floor(src).astype(np.int64), in_size - 1)
        i1 = np.minimum(i0 + 1, in_size - 1)
        frac = (src - i0).astype(np.float32)
        np.add.at(U, (p, i0), 1.0 - frac)
        np.add.at(U, (p, i1), frac)
    else:
        raise ValueError(f"unsupported interpolation mode: {mode}")
    return U


def _largest_divisor(n: int, cap: int, multiple: int = 1) -> int:
    """Largest divisor of n that is <= cap and a multiple of `multiple`;
    falls back to n (a full-extent block is always legal)."""
    cap = min(n, max(1, cap))
    for d in range(cap, 0, -1):
        if n % d == 0 and d % multiple == 0:
            return d
    return n


# ---------------------------------------------------------------------------
# Stage 1: 1x1 conv (channel mixing) on the MXU, conv BEFORE upsample so the
# upsample only touches Cout = C/2 channels.  Lane-flattened spatial layout.
# ---------------------------------------------------------------------------
def _conv1x1_kernel(x_ref, w_ref, o_ref):
    # x_ref: [1, C, TS] bf16   w_ref: [Cout, C] bf16   o_ref: [1, Cout, TS] bf16
    y = jnp.dot(w_ref[...], x_ref[0], preferred_element_type=jnp.float32)
    o_ref[0] = y.astype(o_ref.dtype)


# ---------------------------------------------------------------------------
# Stage 2: separable 2x upsample on the (already halved) channels.
#   * W axis: tiny [W, 2W] matmul (selection matrix for nearest, 0.75/0.25
#     weights for bilinear) -- keeps the lane interleave on the MXU.
#   * H axis: nearest -> each row stored twice (pure data movement);
#             bilinear -> clamped sublane shift + FMA on the VPU.
#   Output block is [1, TC, H, 4W]: [even_row | odd_row] concatenated on the
#   lane axis; the wrapper's free reshape turns [H, 4W] -> [2H, 2W].
# ---------------------------------------------------------------------------
def _upsample2x_kernel(y_ref, uwt_ref, o_ref, *, bilinear: bool):
    # y_ref: [1, TC, H, W] bf16   uwt_ref: [W, 2W] bf16   o_ref: [1, TC, H, 4W]
    _, tc, h, w = y_ref.shape
    y = y_ref[0]                                              # [TC, H, W] bf16

    if bilinear:
        y32 = y.astype(jnp.float32)
        if h > 1:
            # clamped shifts along H (sublane dim): y_up[i] = y[i-1], y_dn[i] = y[i+1]
            y_up = jnp.concatenate([y32[:, 0:1, :], y32[:, 0:h - 1, :]], axis=1)
            y_dn = jnp.concatenate([y32[:, 1:h, :], y32[:, h - 1:h, :]], axis=1)
        else:
            y_up = y32
            y_dn = y32
        # PyTorch bilinear (align_corners=False, scale 2) along H:
        #   out[2i]   = 0.75*y[i] + 0.25*y[i-1]   (clamped)
        #   out[2i+1] = 0.75*y[i] + 0.25*y[i+1]   (clamped)
        even = (0.75 * y32 + 0.25 * y_up).astype(jnp.bfloat16)
        odd = (0.75 * y32 + 0.25 * y_dn).astype(jnp.bfloat16)
    else:
        even = y
        odd = y

    uwt = uwt_ref[...]                                        # [W, 2W]
    # Leading-dim merge is layout-preserving; the matmul does the W interleave.
    ew = jnp.dot(even.reshape(tc * h, w), uwt,
                 preferred_element_type=jnp.float32)          # [TC*H, 2W]
    if bilinear:
        ow = jnp.dot(odd.reshape(tc * h, w), uwt,
                     preferred_element_type=jnp.float32)      # [TC*H, 2W]
    else:
        ow = ew                                               # nearest: rows identical

    both = jnp.concatenate([ew, ow], axis=-1)                 # [TC*H, 4W], lane-dense
    o_ref[0] = both.reshape(tc, h, 4 * w).astype(o_ref.dtype)


def upsample2x_conv1x1(x_nchw: jax.Array, conv_weight: jax.Array,
                       *, mode: str = "nearest",
                       out_dtype=jnp.bfloat16) -> jax.Array:
    """2x spatial upsample + pointwise (1x1, bias-free) conv.

    x_nchw:      [N, C, H, W]
    conv_weight: [Cout, C] (or [Cout, C, 1, 1])
    returns:     [N, Cout, 2H, 2W] in `out_dtype` (default bf16)
    """
    N, C, H, W = x_nchw.shape
    if conv_weight.ndim == 4:                       # [Cout, C, 1, 1] -> [Cout, C]
        conv_weight = conv_weight.reshape(conv_weight.shape[0],
                                          conv_weight.shape[1])
    Cout, Cw = conv_weight.shape
    assert Cw == C, (Cw, C)
    HW = H * W
    bilinear = (mode == "bilinear")

    # Tiny W-axis interpolation matrix (exact in bf16 for both modes).
    # (Also validates `mode`.)
    UwT = jnp.asarray(_interp_matrix_np(W, mode).T, dtype=jnp.bfloat16)   # [W, 2W]
    Wc = conv_weight.astype(jnp.bfloat16)                                 # [Cout, C]

    # Channel-major, free reshape of NCHW (no transpose).
    x_b = x_nchw.astype(jnp.bfloat16).reshape(N, C, HW)

    # ---- Stage 1: 1x1 conv, tiled over the flattened spatial axis. --------
    # TODO(synk): for tiny Cout (like this unit test) the MXU M-dim is a
    #             sliver; real decoder channel counts (>=32) are fine.
    ts_cap = max(128, (4 * 1024 * 1024) // max(1, 2 * (C + Cout)))  # elements
    TS = _largest_divisor(HW, ts_cap, multiple=128)
    flops1 = 2 * N * Cout * C * HW
    bytes1 = 2 * (N * C * HW + Cout * C + N * Cout * HW)
    y = pl.pallas_call(
        _conv1x1_kernel,
        out_shape=jax.ShapeDtypeStruct((N, Cout, HW), jnp.bfloat16),
        grid_spec=pltpu.PrefetchScalarGridSpec(
            num_scalar_prefetch=0,
            grid=(N, HW // TS),
            in_specs=[
                pl.BlockSpec((1, C, TS), lambda n, s: (n, 0, s)),
                pl.BlockSpec((Cout, C), lambda n, s: (0, 0)),
            ],
            out_specs=pl.BlockSpec((1, Cout, TS), lambda n, s: (n, 0, s)),
        ),
        compiler_params=pltpu.CompilerParams(
            dimension_semantics=("parallel", "arbitrary"),
            vmem_limit_bytes=_VMEM_LIMIT_BYTES),
        cost_estimate=pl.CostEstimate(flops=flops1, transcendentals=0,
                                      bytes_accessed=bytes1),
    )(x_b, Wc)

    # Free HBM reshape: lane-flattened conv layout -> spatial layout.
    y4 = y.reshape(N, Cout, H, W)

    # ---- Stage 2: separable 2x upsample, tiled over (N, Cout). -------------
    # Channel tile sized so double-buffered in/out blocks + f32 temps stay
    # well inside v7x's 64 MiB VMEM (~32 B per TC*H*W element).
    tc_cap = max(1, (1 << 20) // max(1, H * W))
    TC = _largest_divisor(Cout, tc_cap)
    out_bytes = np.dtype(out_dtype).itemsize
    flops2 = ((2 if bilinear else 1) * 2 * N * Cout * H * W * (2 * W)
              + (6 * N * Cout * H * W if bilinear else 0))
    bytes2 = 2 * N * Cout * HW + 2 * W * (2 * W) + out_bytes * N * Cout * 4 * HW
    out = pl.pallas_call(
        functools.partial(_upsample2x_kernel, bilinear=bilinear),
        out_shape=jax.ShapeDtypeStruct((N, Cout, H, 4 * W), out_dtype),
        grid_spec=pltpu.PrefetchScalarGridSpec(
            num_scalar_prefetch=0,
            grid=(N, Cout // TC),
            in_specs=[
                pl.BlockSpec((1, TC, H, W), lambda n, c: (n, c, 0, 0)),
                pl.BlockSpec((W, 2 * W), lambda n, c: (0, 0)),
            ],
            out_specs=pl.BlockSpec((1, TC, H, 4 * W), lambda n, c: (n, c, 0, 0)),
        ),
        compiler_params=pltpu.CompilerParams(
            dimension_semantics=("parallel", "arbitrary"),
            vmem_limit_bytes=_VMEM_LIMIT_BYTES),
        cost_estimate=pl.CostEstimate(flops=flops2, transcendentals=0,
                                      bytes_accessed=bytes2),
    )(y4, UwT)

    # Free reshapes: [H, 4W] == [H, 2, 2W] row-major == [2H, 2W] interleaved.
    return out.reshape(N, Cout, 2 * H, 2 * W)


if __name__ == "__main__":
    key = jax.random.PRNGKey(0)
    k_x, k_w = jax.random.split(key)

    N, C, H, W = 2, 4, 16, 16
    Cout = C // 2

    x = jax.random.normal(k_x, (N, C, H, W), dtype=jnp.float32)
    # Conv2d(C, C//2, 1, bias=False)-shaped weights (kaiming-uniform-like bound).
    bound = 1.0 / np.sqrt(C)
    conv_w = jax.random.uniform(k_w, (Cout, C), minval=-bound, maxval=bound,
                                dtype=jnp.float32)

    fwd = jax.jit(upsample2x_conv1x1, static_argnames=("mode",))

    for mode in ("nearest", "bilinear"):
        out = fwd(x, conv_w, mode=mode)
        jax.block_until_ready(out)
        assert out.shape == (N, Cout, 2 * H, 2 * W), out.shape

        # Independent plain-JAX f32 reference: per-axis interpolation matrices
        # applied to x, then the 1x1 conv (upsample-then-conv order, as in the
        # PyTorch module; the kernel's conv-first order is algebraically equal).
        uh = jnp.asarray(_interp_matrix_np(H, mode))
        uw = jnp.asarray(_interp_matrix_np(W, mode))
        ref = jnp.einsum("yh,xw,nchw,oc->noyx", uh, uw, x, conv_w)

        out_f32 = out.astype(jnp.float32)
        # bf16 MXU operands / bf16 output with f32 accumulation -> loose tol.
        assert jnp.allclose(out_f32, ref, atol=5e-2, rtol=5e-2), (
            mode, float(jnp.max(jnp.abs(out_f32 - ref))))

    print("KERNEL_OK")
</pallas_src>

<mosaic_0001>
module attributes {stable_mosaic.version = 11 : i64} {
  func.func @_conv1x1_kernel(%arg0: i32, %arg1: i32, %arg2: memref<1x4x256xbf16, #tpu.memory_space<vmem>>, %arg3: memref<2x4xbf16, #tpu.memory_space<vmem>>, %arg4: memref<1x2x256xbf16, #tpu.memory_space<vmem>>) attributes {dimension_semantics = [#tpu.dimension_semantics<parallel>, #tpu.dimension_semantics<arbitrary>], iteration_bounds = array<i64: 2, 1>, scalar_prefetch = 0 : i64, scratch_operands = 0 : i64, tpu.core_type = #tpu.core_type<tc>, window_params = [{transform_indices = @transform_0, window_bounds = array<i64: 1, 4, 256>}, {pipeline_mode = #tpu.pipeline_mode<synchronous>, transform_indices = @transform_1, window_bounds = array<i64: 2, 4>}, {transform_indices = @transform_2, window_bounds = array<i64: 1, 2, 256>}]} {
    %c0 = arith.constant 0 : index
    %c0_0 = arith.constant 0 : index
    %0 = vector.load %arg3[%c0, %c0_0] : memref<2x4xbf16, #tpu.memory_space<vmem>>, vector<2x4xbf16>
    %c0_1 = arith.constant 0 : index
    %c0_2 = arith.constant 0 : index
    %c0_3 = arith.constant 0 : index
    %1 = vector.load %arg2[%c0_1, %c0_2, %c0_3] : memref<1x4x256xbf16, #tpu.memory_space<vmem>>, vector<1x4x256xbf16>
    %2 = vector.shape_cast %1 : vector<1x4x256xbf16> to vector<4x256xbf16>
    %cst = arith.constant dense<0.000000e+00> : vector<2x256xf32>
    %3 = tpu.matmul %0, %2, %cst {dimension_numbers = #tpu.dot_dimension_numbers<[1], [0], [0], [1], [0, 0, 1, 1], [], []>} : vector<2x4xbf16>, vector<4x256xbf16>, vector<2x256xf32> -> vector<2x256xf32>
    %4 = arith.truncf %3 : vector<2x256xf32> to vector<2x256xbf16>
    %c0_4 = arith.constant 0 : index
    %c0_5 = arith.constant 0 : index
    %c0_6 = arith.constant 0 : index
    %5 = vector.load %arg4[%c0_4, %c0_5, %c0_6] : memref<1x2x256xbf16, #tpu.memory_space<vmem>>, vector<1x2x256xbf16>
    %6 = vector.shape_cast %5 : vector<1x2x256xbf16> to vector<2x256xbf16>
    %7 = vector.shape_cast %4 : vector<2x256xbf16> to vector<1x2x256xbf16>
    tpu.vector_store %arg4[%c0_4, %c0_5, %c0_6], %7 {strides = array<i32>} : memref<1x2x256xbf16, #tpu.memory_space<vmem>>, vector<1x2x256xbf16>,
    return
  }
  func.func @transform_0(%arg0: i32, %arg1: i32) -> (i32, i32, i32) {
    %c0_i32 = arith.constant 0 : i32
    %c0_i32_0 = arith.constant 0 : i32
    return %arg0, %c0_i32, %arg1 : i32, i32, i32
  }
  func.func @transform_1(%arg0: i32, %arg1: i32) -> (i32, i32) {
    %c0_i32 = arith.constant 0 : i32
    %c0_i32_0 = arith.constant 0 : i32
    %c0_i32_1 = arith.constant 0 : i32
    return %c0_i32, %c0_i32_0 : i32, i32
  }
  func.func @transform_2(%arg0: i32, %arg1: i32) -> (i32, i32, i32) {
    %c0_i32 = arith.constant 0 : i32
    %c0_i32_0 = arith.constant 0 : i32
    return %arg0, %c0_i32, %arg1 : i32, i32, i32
  }
}

module attributes {stable_mosaic.version = 11 : i64} {
  func.func @_upsample2x_kernel(%arg0: i32, %arg1: i32, %arg2: memref<1x2x16x16xbf16, #tpu.memory_space<vmem>>, %arg3: memref<16x32xbf16, #tpu.memory_space<vmem>>, %arg4: memref<1x2x16x64xbf16, #tpu.memory_space<vmem>>) attributes {dimension_semantics = [#tpu.dimension_semantics<parallel>, #tpu.dimension_semantics<arbitrary>], iteration_bounds = array<i64: 2, 1>, scalar_prefetch = 0 : i64, scratch_operands = 0 : i64, tpu.core_type = #tpu.core_type<tc>, window_params = [{transform_indices = @transform_0, window_bounds = array<i64: 1, 2, 16, 16>}, {pipeline_mode = #tpu.pipeline_mode<synchronous>, transform_indices = @transform_1, window_bounds = array<i64: 16, 32>}, {transform_indices = @transform_2, window_bounds = array<i64: 1, 2, 16, 64>}]} {
    %c0 = arith.constant 0 : index
    %c0_0 = arith.constant 0 : index
    %c0_1 = arith.constant 0 : index
    %c0_2 = arith.constant 0 : index
    %0 = vector.load %arg2[%c0, %c0_0, %c0_1, %c0_2] : memref<1x2x16x16xbf16, #tpu.memory_space<vmem>>, vector<1x2x16x16xbf16>
    %1 = vector.shape_cast %0 : vector<1x2x16x16xbf16> to vector<2x16x16xbf16>
    %c0_3 = arith.constant 0 : index
    %c0_4 = arith.constant 0 : index
    %2 = vector.load %arg3[%c0_3, %c0_4] : memref<16x32xbf16, #tpu.memory_space<vmem>>, vector<16x32xbf16>
    %3 = vector.shape_cast %1 : vector<2x16x16xbf16> to vector<32x16xbf16>
    %cst = arith.constant dense<0.000000e+00> : vector<32x32xf32>
    %4 = tpu.matmul %3, %2, %cst {dimension_numbers = #tpu.dot_dimension_numbers<[1], [0], [0], [1], [0, 0, 1, 1], [], []>} : vector<32x16xbf16>, vector<16x32xbf16>, vector<32x32xf32> -> vector<32x32xf32>
    %5 = tpu.concatenate %4, %4 in 1 : vector<32x32xf32>, vector<32x32xf32> -> vector<32x64xf32>
    %6 = vector.shape_cast %5 : vector<32x64xf32> to vector<2x16x64xf32>
    %7 = arith.truncf %6 : vector<2x16x64xf32> to vector<2x16x64xbf16>
    %c0_5 = arith.constant 0 : index
    %c0_6 = arith.constant 0 : index
    %c0_7 = arith.constant 0 : index
    %c0_8 = arith.constant 0 : index
    %8 = vector.load %arg4[%c0_5, %c0_6, %c0_7, %c0_8] : memref<1x2x16x64xbf16, #tpu.memory_space<vmem>>, vector<1x2x16x64xbf16>
    %9 = vector.shape_cast %8 : vector<1x2x16x64xbf16> to vector<2x16x64xbf16>
    %10 = vector.shape_cast %7 : vector<2x16x64xbf16> to vector<1x2x16x64xbf16>
    tpu.vector_store %arg4[%c0_5, %c0_6, %c0_7, %c0_8], %10 {strides = array<i32>} : memref<1x2x16x64xbf16, #tpu.memory_space<vmem>>, vector<1x2x16x64xbf16>,
    return
  }
  func.func @transform_0(%arg0: i32, %arg1: i32) -> (i32, i32, i32, i32) {
    %c0_i32 = arith.constant 0 : i32
    %c0_i32_0 = arith.constant 0 : i32
    %c0_i32_1 = arith.constant 0 : i32
    return %arg0, %arg1, %c0_i32, %c0_i32_0 : i32, i32, i32, i32
  }
  func.func @transform_1(%arg0: i32, %arg1: i32) -> (i32, i32) {
    %c0_i32 = arith.constant 0 : i32
    %c0_i32_0 = arith.constant 0 : i32
    %c0_i32_1 = arith.constant 0 : i32
    return %c0_i32, %c0_i32_0 : i32, i32
  }
  func.func @transform_2(%arg0: i32, %arg1: i32) -> (i32, i32, i32, i32) {
    %c0_i32 = arith.constant 0 : i32
    %c0_i32_0 = arith.constant 0 : i32
    %c0_i32_1 = arith.constant 0 : i32
    return %arg0, %arg1, %c0_i32, %c0_i32_0 : i32, i32, i32, i32
  }
}

</mosaic_0001>

<llo_original>
// kernel: upsample2x_conv1x1.2
$region0: #{upsample2x_conv1x1.2}
  #allocation0 [shape = 'u32[]', space=smem, size = 0x4, offset = 0x4, fixed_abs, tag = 'smem constant byte address 0x4 - core index']
  #allocation1 [shape = 'u32[144,128]{1,0:T(1,128)}', space=vmem, size = 0x12000, scoped, tag = 'internal scratch']
  %s0 = inlined_call_operand.vmem [shape: bf16[2,4,256], index: 0, kind: input, shape index: {}]
  %s1 = inlined_call_operand.vmem [shape: bf16[2,4], index: 1, kind: input, shape index: {}]
  %s2 = inlined_call_operand.vmem [shape: bf16[2,2,256], index: 2, kind: output, shape index: {}]
  %s3 = sld [smem:[#allocation0]]
  $region41: #{upsample2x_conv1x1.2} parent=0
    _
  %s5 = ssub.s32 1, %s3
  %s6 = scalar_select 0, %s5, %s3
  loop: start=0, step=1, limit=4
  $region2: #{upsample2x_conv1x1.2} parent=0 // loop_pre_header
    _
  $region3: #{upsample2x_conv1x1.2} parent=0 // loop_header
    %s8 = sphi 0, %s12
    %p9 = scmp.ge.s32.totalorder %s8, 4
    %s15 = sphi 0, %s27
    %s16 = sphi 0, %s23
    %s17 = sphi 0, %s15
    %s18 = sphi 0, %s16
    %s19 = sphi 0, %s17
    %s20 = sphi 0, %s18
    %s32 = sphi 0, %s34
    %s35 = sphi 0, %s32
    %s36 = sphi 0, %s35
    %s52 = sphi 0, %s36
    %s56 = sphi 0, %s56
    %s58 = sphi 0, %s56
    %s59 = sphi 0, %s58
    %s73 = sphi 0, %s59
    %s81 = sphi 0, %s83
    %s84 = sphi 0, %s81
    %s85 = sphi 0, %s84
    %s101 = sphi 0, %s85
  $region4: #{upsample2x_conv1x1.2} parent=0 // loop_header_branch
    %11 = sbr.rel (%p9) target = $region8
  $region5: #{upsample2x_conv1x1.2} parent=0 // loop_body
    %s13 = ssub.s32 %s8, 1
    %s14 = ssub.s32 %s8, 2
    %s21 = sadd.s32 1, %s16
    %p22 = scmp.ge.s32.totalorder %s21, 1
    %s23 = scalar_select %p22, 0, %s21
    %s24 = sadd.s32 1, %s15
    %s25 = scalar_select %p22, %s24, %s15
    %p26 = scmp.ge.s32.totalorder %s25, 2
    %s27 = scalar_select %p26, 0, %s25
    %s28 = ssub.s32 %s15, %s27
    %s29 = ssub.s32 %s16, %s23
    %s30 = sor.u32 %s28, %s29
    %p31 = scmp.eq.s32.totalorder %s30, 0
    %s33 = sadd.s32 %s32, 1
    %s34 = scalar_select %p31, %s32, %s33
    %p37 = pneg %p31
    %p38 = scmp.eq.s32.totalorder %s8, 1
    %p39 = por %p37, %p38
    %p40 = scmp.ne.s32.totalorder %s32, %s35
    %p41 = scmp.eq.s32.totalorder %s8, 0
    %p42 = por %p40, %p41
    %p43 = scmp.ne.s32.totalorder %s32, %s35
    %p44 = scmp.eq.s32.totalorder %s13, 1
    %p45 = por %p43, %p44
    %p46 = scmp.ne.s32.totalorder %s35, %s36
    %p47 = scmp.eq.s32.totalorder %s13, 0
    %p48 = por %p46, %p47
    %p49 = scmp.ne.s32.totalorder %s35, %s36
    %p50 = scmp.eq.s32.totalorder %s14, 1
    %p51 = por %p49, %p50
    %p53 = scmp.ne.s32.totalorder %s36, %s52
    %p54 = scmp.eq.s32.totalorder %s14, 0
    %p55 = por %p53, %p54
    %s57 = sadd.s32 %s56, 1
    %p60 = scmp.eq.s32.totalorder %s8, 1
    %p61 = scmp.ne.s32.totalorder %s56, %s58
    %p62 = scmp.eq.s32.totalorder %s8, 0
    %p63 = por %p61, %p62
    %p64 = scmp.ne.s32.totalorder %s56, %s58
    %p65 = scmp.eq.s32.totalorder %s13, 1
    %p66 = por %p64, %p65
    %p67 = scmp.ne.s32.totalorder %s58, %s59
    %p68 = scmp.eq.s32.totalorder %s13, 0
    %p69 = por %p67, %p68
    %p70 = scmp.ne.s32.totalorder %s58, %s59
    %p71 = scmp.eq.s32.totalorder %s14, 1
    %p72 = por %p70, %p71
    %p74 = scmp.ne.s32.totalorder %s59, %s73
    %p75 = scmp.eq.s32.totalorder %s14, 0
    %p76 = por %p74, %p75
    %s77 = ssub.s32 %s15, %s27
    %s78 = ssub.s32 %s16, %s23
    %s79 = sor.u32 %s77, %s78
    %p80 = scmp.eq.s32.totalorder %s79, 0
    %s82 = sadd.s32 %s81, 1
    %s83 = scalar_select %p80, %s81, %s82
    %p86 = pneg %p80
    %p87 = scmp.eq.s32.totalorder %s8, 1
    %p88 = por %p86, %p87
    %p89 = scmp.ne.s32.totalorder %s81, %s84
    %p90 = scmp.eq.s32.totalorder %s8, 0
    %p91 = por %p89, %p90
    %p92 = scmp.ne.s32.totalorder %s81, %s84
    %p93 = scmp.eq.s32.totalorder %s13, 1
    %p94 = por %p92, %p93
    %p95 = scmp.ne.s32.totalorder %s84, %s85
    %p96 = scmp.eq.s32.totalorder %s13, 0
    %p97 = por %p95, %p96
    %p98 = scmp.ne.s32.totalorder %s84, %s85
    %p99 = scmp.eq.s32.totalorder %s14, 1
    %p100 = por %p98, %p99
    %p102 = scmp.ne.s32.totalorder %s85, %s101
    %p103 = scmp.eq.s32.totalorder %s14, 0
    %p104 = por %p102, %p103
    %p105 = scmp.le.s32.totalorder 1, %s8
    %p106 = scmp.lt.s32.totalorder %s8, 3
    %p107 = pnand %p105, %p106
    %p108 = pneg %p107
    // Predicated region
    $region9: #{upsample2x_conv1x1.2} parent=5 // pred_check
      _
    $region10: #{upsample2x_conv1x1.2} parent=5 // pred_check_branch
      %110 = sbr.rel (%p107) target = $region12
    $region11: #{upsample2x_conv1x1.2} parent=5 // pred_region
      %s111 = ssub.s32 %s8, 1
      // Predicated region
      $region13: #{upsample2x_conv1x1.2} parent=11 // pred_check
        %p112 = pneg %p69
      $region14: #{upsample2x_conv1x1.2} parent=11 // pred_check_branch
        %114 = sbr.rel (%p112) target = $region16
      $region15: #{upsample2x_conv1x1.2} parent=11 // pred_region
        _
      $region16: #{upsample2x_conv1x1.2} parent=11 // pred_fallthru
        _
    $region12: #{upsample2x_conv1x1.2} parent=5 // pred_fallthru
      _
    %p115 = scmp.lt.s32.totalorder %s8, 2
    // Predicated region
    $region17: #{upsample2x_conv1x1.2} parent=5 // pred_check
      %p116 = pneg %p115
    $region18: #{upsample2x_conv1x1.2} parent=5 // pred_check_branch
      %118 = sbr.rel (%p116) target = $region20
    $region19: #{upsample2x_conv1x1.2} parent=5 // pred_region
      // Predicated region
      $region21: #{upsample2x_conv1x1.2} parent=19 // pred_check
        %p119 = pneg %p42
      $region22: #{upsample2x_conv1x1.2} parent=19 // pred_check_branch
        %121 = sbr.rel (%p119) target = $region24
      $region23: #{upsample2x_conv1x1.2} parent=19 // pred_region
        %s122 = smul.u32 2, %s16
        %p123 = scmp.lt.s32.totalorder %s15, 1
        %s124 = scalar_select %p123, %s15, 1
        %p125 = scmp.lt.s32.totalorder %s122, 1
        %s126 = scalar_select %p125, %s122, 1
        %s127 = smul.addr %s124, 2
        %s128 = sadd.s32 %s126, %s127
        %s129 = smul.addr %s128, 2
        %s130 = scalar_lea.vmem %s0, %s129
        %s131 = smul.u32 2, %s16
      $region24: #{upsample2x_conv1x1.2} parent=19 // pred_fallthru
        _
    $region20: #{upsample2x_conv1x1.2} parent=5 // pred_fallthru
      _
    %p132 = scmp.le.s32.totalorder 1, %s8
    %p133 = scmp.lt.s32.totalorder %s8, 3
    %p134 = pnand %p132, %p133
    %p135 = pneg %p134
    // Predicated region
    $region25: #{upsample2x_conv1x1.2} parent=5 // pred_check
      _
    $region26: #{upsample2x_conv1x1.2} parent=5 // pred_check_branch
      %137 = sbr.rel (%p134) target = $region28
    $region27: #{upsample2x_conv1x1.2} parent=5 // pred_region
      %s138 = ssub.s32 %s8, 1
      %s139 = smul.u32 2, %s18
      %p140 = scmp.lt.s32.totalorder %s17, 1
      %s141 = scalar_select %p140, %s17, 1
      %p142 = scmp.lt.s32.totalorder %s139, 1
      %s143 = scalar_select %p142, %s139, 1
      %s144 = smul.addr %s141, 2
      %s145 = sadd.s32 %s143, %s144
      %s146 = smul.addr %s145, 2
      %s147 = scalar_lea.vmem %s0, %s146
      %p148 = pneg %p48
      %p149 = pneg %p45
      %p150 = pneg %p69
      %p151 = pneg %p66
      %p152 = pneg %p97
      %p153 = pneg %p94
      %s154 = smul.u32 2, %s18
      %p155 = scmp.lt.s32.totalorder %s17, 1
      %s156 = scalar_select %p155, %s17, 1
      %p157 = scmp.lt.s32.totalorder %s154, 1
      %s158 = scalar_select %p157, %s154, 1
      %s159 = smul.addr %s156, 2
      %s160 = sadd.s32 %s158, %s159
      %s161 = scalar_lea.vmem %s2, %s160
      %s162 = smul.u32 2, %s18
      %p163 = scmp.lt.s32.totalorder %s17, 1
      %s164 = scalar_select %p163, %s17, 1
      %p165 = scmp.lt.s32.totalorder %s162, 1
      %s166 = scalar_select %p165, %s162, 1
      %s167 = smul.addr %s164, 2
      %s168 = sadd.s32 %s166, %s167
      %s169 = smul.addr %s168, 2
      %s170 = scalar_lea.vmem %s0, %s169
      %s171 = smul.u32 2, %s18
      %s172 = smul.u32 2, %s18
      %p173 = scmp.lt.s32.totalorder %s17, 1
      %s174 = scalar_select %p173, %s17, 1
      %p175 = scmp.lt.s32.totalorder %s172, 1
      %s176 = scalar_select %p175, %s172, 1
      %s177 = smul.addr %s174, 2
      %s178 = sadd.s32 %s176, %s177
      %s179 = scalar_lea.vmem %s2, %s178
      %s180 = smul.u32 2, %s18
      %v182 = vld [vmem:[%s1] sm:$0x1]
      %v183 = vld [vmem:[%s170] sm:$0xf]
      %v186 = vunpack.c.l.s4 1983009808
      %v187 = vunpack.c.0.s8 %v186
      %v188 = vlaneseq
      %v189 = vshrl.u32 %v188, 7
      %v190 = vsub.s32 %v187, %v189
      %v191 = vrot.slane %v183, %v190
      %v192 = vcombine.high %v191, %v191
      %vm193 = vcmask 31744
      %v195 = vsel %vm193, %v182, 0
      %vm197 = vcmask 1041408
      %v199 = vsel %vm197, %v191, 0
      %v202 = vsel %vm197, %v192, 0
      %204 = vmatprep.subr.bf16.mxu0 %v202
      %205 = vmatpush1.bf16.msra.mxu0 %v199
      %206 = vmatprep.subr.bf16.mxu0 0
      %207 = vmatpush1.bf16.msra.mxu0 0
      %208 = vmatprep.subr.bf16.mxu0 0
      %209 = vmatpush1.bf16.msra.mxu0 0
      %210 = vmatprep.subr.bf16.mxu0 0
      %211 = vmatpush1.bf16.msra.mxu0 0
      %212 = vmatprep.subr.bf16.mxu0 0
      %213 = vmatpush1.bf16.msra.mxu0 0
      %214 = vmatprep.subr.bf16.mxu0 0
      %215 = vmatpush1.bf16.msra.mxu0 0
      %216 = vmatprep.subr.bf16.mxu0 0
      %217 = vmatpush1.bf16.msra.mxu0 0
      %218 = vmatprep.subr.bf16.mxu0 0
      %219 = vmatpush1.bf16.msra.mxu0 0
      %220 = vmatprep.subr.bf16.mxu0 0
      %221 = vmatpush1.bf16.msra.mxu0 0
      %222 = vmatprep.subr.bf16.mxu0 0
      %223 = vmatpush1.bf16.msra.mxu0 0
      %224 = vmatprep.subr.bf16.mxu0 0
      %225 = vmatpush1.bf16.msra.mxu0 0
      %226 = vmatprep.subr.bf16.mxu0 0
      %227 = vmatpush1.bf16.msra.mxu0 0
      %228 = vmatprep.subr.bf16.mxu0 0
      %229 = vmatpush1.bf16.msra.mxu0 0
      %230 = vmatprep.subr.bf16.mxu0 0
      %231 = vmatpush1.bf16.msra.mxu0 0
      %232 = vmatprep.subr.bf16.mxu0 0
      %233 = vmatpush1.bf16.msra.mxu0 0
      %234 = vmatprep.subr.bf16.mxu0 0
      %235 = vmatpush1.bf16.msra.mxu0 0
      %236 = vmatprep.mubr.bf16.mxu0 0
      %237 = vmatmul.mubr.bf16.gmra.mrb[0].mxu0 %v195
      %v238 = vpop.f32.mrb[0].mxu0
      %v239 = vadd.f32 0.0, %v238
      %v240 = vpop.f32.mrb[0].mxu0
      %v241 = vadd.f32 0.0, %v240
      %v242 = vpop.f32.mrb[0].mxu0
      %v243 = vpop.f32.mrb[0].mxu0
      %244 = vdwg.mxu0
      %v245 = vpack.c.bf16 %v239, %v239
      %v246 = vpack.c.bf16 %v241, %v241
      %v249 = vcombine.low %v245, %v246
      %v251 = vunpack.c.l.s4 1966171168
      %v252 = vunpack.c.0.s8 %v251
      %v253 = vlaneseq
      %v254 = vshrl.u32 %v253, 7
      %v255 = vsub.s32 %v252, %v254
      %v256 = vrot.slane %v249, %v255
      %v258 = vunpack.c.l.s4 1966171168
      %v259 = vunpack.c.0.s8 %v258
      %v260 = vlaneseq
      %v261 = vshrl.u32 %v260, 7
      %v262 = vsub.s32 %v259, %v261
      %v263 = vrot.slane %v256, %v262
      %265 = vst [vmem:[%s179] sm:$0x3] %v263
      %s266 = smul.u32 2, %s18
      %p267 = scmp.lt.s32.totalorder %s17, 1
      %s268 = scalar_select %p267, %s17, 1
      %p269 = scmp.lt.s32.totalorder %s266, 1
      %s270 = scalar_select %p269, %s266, 1
      %s271 = smul.addr %s268, 2
      %s272 = sadd.s32 %s270, %s271
      %s273 = scalar_lea.vmem %s2, %s272
      // Predicated region
      $region29: #{upsample2x_conv1x1.2} parent=27 // pred_check
        %p274 = pneg %p94
      $region30: #{upsample2x_conv1x1.2} parent=27 // pred_check_branch
        %276 = sbr.rel (%p274) target = $region32
      $region31: #{upsample2x_conv1x1.2} parent=27 // pred_region
        %s277 = smul.u32 2, %s18
      $region32: #{upsample2x_conv1x1.2} parent=27 // pred_fallthru
        _
    $region28: #{upsample2x_conv1x1.2} parent=5 // pred_fallthru
      _
    %p278 = scmp.le.s32.totalorder 2, %s8
    // Predicated region
    $region33: #{upsample2x_conv1x1.2} parent=5 // pred_check
      %p279 = pneg %p278
    $region34: #{upsample2x_conv1x1.2} parent=5 // pred_check_branch
      %281 = sbr.rel (%p279) target = $region36
    $region35: #{upsample2x_conv1x1.2} parent=5 // pred_region
      %s282 = ssub.s32 %s8, 2
      // Predicated region
      $region37: #{upsample2x_conv1x1.2} parent=35 // pred_check
        %p283 = pneg %p100
      $region38: #{upsample2x_conv1x1.2} parent=35 // pred_check_branch
        %285 = sbr.rel (%p283) target = $region40
      $region39: #{upsample2x_conv1x1.2} parent=35 // pred_region
        %s286 = smul.u32 2, %s20
        %p287 = scmp.lt.s32.totalorder %s19, 1
        %s288 = scalar_select %p287, %s19, 1
        %p289 = scmp.lt.s32.totalorder %s286, 1
        %s290 = scalar_select %p289, %s286, 1
        %s291 = smul.addr %s288, 2
        %s292 = sadd.s32 %s290, %s291
        %s293 = scalar_lea.vmem %s2, %s292
      $region40: #{upsample2x_conv1x1.2} parent=35 // pred_fallthru
        _
    $region36: #{upsample2x_conv1x1.2} parent=5 // pred_fallthru
      _
  $region6: #{upsample2x_conv1x1.2} parent=0 // loop_footer
    %s12 = sadd.s32 1, %s8
  $region7: #{upsample2x_conv1x1.2} parent=0 // loop_footer_branch
    %7 = sbr.rel target = $region3
  $region8: #{upsample2x_conv1x1.2} parent=0 // loop_exit
    _

// kernel: upsample2x_conv1x1.3
$region0: #{upsample2x_conv1x1.3}
  #allocation0 [shape = 'u32[]', space=smem, size = 0x4, offset = 0x4, fixed_abs, tag = 'smem constant byte address 0x4 - core index']
  #allocation1 [shape = 'u32[144,128]{1,0:T(1,128)}', space=vmem, size = 0x12000, scoped, tag = 'internal scratch']
  %s0 = inlined_call_operand.vmem [shape: bf16[2,2,16,16], index: 0, kind: input, shape index: {}]
  %s1 = inlined_call_operand.vmem [shape: bf16[16,32], index: 1, kind: input, shape index: {}]
  %s2 = inlined_call_operand.vmem [shape: bf16[2,2,16,64], index: 2, kind: output, shape index: {}]
  %s3 = sld [smem:[#allocation0]]
  $region41: #{upsample2x_conv1x1.3} parent=0
    _
  %s5 = ssub.s32 1, %s3
  %s6 = scalar_select 0, %s5, %s3
  loop: start=0, step=1, limit=4
  $region2: #{upsample2x_conv1x1.3} parent=0 // loop_pre_header
    _
  $region3: #{upsample2x_conv1x1.3} parent=0 // loop_header
    %s8 = sphi 0, %s12
    %p9 = scmp.ge.s32.totalorder %s8, 4
    %s15 = sphi 0, %s27
    %s16 = sphi 0, %s23
    %s17 = sphi 0, %s15
    %s18 = sphi 0, %s16
    %s19 = sphi 0, %s17
    %s20 = sphi 0, %s18
    %s32 = sphi 0, %s34
    %s35 = sphi 0, %s32
    %s36 = sphi 0, %s35
    %s52 = sphi 0, %s36
    %s56 = sphi 0, %s56
    %s58 = sphi 0, %s56
    %s59 = sphi 0, %s58
    %s73 = sphi 0, %s59
    %s81 = sphi 0, %s83
    %s84 = sphi 0, %s81
    %s85 = sphi 0, %s84
    %s101 = sphi 0, %s85
  $region4: #{upsample2x_conv1x1.3} parent=0 // loop_header_branch
    %11 = sbr.rel (%p9) target = $region8
  $region5: #{upsample2x_conv1x1.3} parent=0 // loop_body
    %s13 = ssub.s32 %s8, 1
    %s14 = ssub.s32 %s8, 2
    %s21 = sadd.s32 1, %s16
    %p22 = scmp.ge.s32.totalorder %s21, 1
    %s23 = scalar_select %p22, 0, %s21
    %s24 = sadd.s32 1, %s15
    %s25 = scalar_select %p22, %s24, %s15
    %p26 = scmp.ge.s32.totalorder %s25, 2
    %s27 = scalar_select %p26, 0, %s25
    %s28 = ssub.s32 %s15, %s27
    %s29 = ssub.s32 %s16, %s23
    %s30 = sor.u32 %s28, %s29
    %p31 = scmp.eq.s32.totalorder %s30, 0
    %s33 = sadd.s32 %s32, 1
    %s34 = scalar_select %p31, %s32, %s33
    %p37 = pneg %p31
    %p38 = scmp.eq.s32.totalorder %s8, 1
    %p39 = por %p37, %p38
    %p40 = scmp.ne.s32.totalorder %s32, %s35
    %p41 = scmp.eq.s32.totalorder %s8, 0
    %p42 = por %p40, %p41
    %p43 = scmp.ne.s32.totalorder %s32, %s35
    %p44 = scmp.eq.s32.totalorder %s13, 1
    %p45 = por %p43, %p44
    %p46 = scmp.ne.s32.totalorder %s35, %s36
    %p47 = scmp.eq.s32.totalorder %s13, 0
    %p48 = por %p46, %p47
    %p49 = scmp.ne.s32.totalorder %s35, %s36
    %p50 = scmp.eq.s32.totalorder %s14, 1
    %p51 = por %p49, %p50
    %p53 = scmp.ne.s32.totalorder %s36, %s52
    %p54 = scmp.eq.s32.totalorder %s14, 0
    %p55 = por %p53, %p54
    %s57 = sadd.s32 %s56, 1
    %p60 = scmp.eq.s32.totalorder %s8, 1
    %p61 = scmp.ne.s32.totalorder %s56, %s58
    %p62 = scmp.eq.s32.totalorder %s8, 0
    %p63 = por %p61, %p62
    %p64 = scmp.ne.s32.totalorder %s56, %s58
    %p65 = scmp.eq.s32.totalorder %s13, 1
    %p66 = por %p64, %p65
    %p67 = scmp.ne.s32.totalorder %s58, %s59
    %p68 = scmp.eq.s32.totalorder %s13, 0
    %p69 = por %p67, %p68
    %p70 = scmp.ne.s32.totalorder %s58, %s59
    %p71 = scmp.eq.s32.totalorder %s14, 1
    %p72 = por %p70, %p71
    %p74 = scmp.ne.s32.totalorder %s59, %s73
    %p75 = scmp.eq.s32.totalorder %s14, 0
    %p76 = por %p74, %p75
    %s77 = ssub.s32 %s15, %s27
    %s78 = ssub.s32 %s16, %s23
    %s79 = sor.u32 %s77, %s78
    %p80 = scmp.eq.s32.totalorder %s79, 0
    %s82 = sadd.s32 %s81, 1
    %s83 = scalar_select %p80, %s81, %s82
    %p86 = pneg %p80
    %p87 = scmp.eq.s32.totalorder %s8, 1
    %p88 = por %p86, %p87
    %p89 = scmp.ne.s32.totalorder %s81, %s84
    %p90 = scmp.eq.s32.totalorder %s8, 0
    %p91 = por %p89, %p90
    %p92 = scmp.ne.s32.totalorder %s81, %s84
    %p93 = scmp.eq.s32.totalorder %s13, 1
    %p94 = por %p92, %p93
    %p95 = scmp.ne.s32.totalorder %s84, %s85
    %p96 = scmp.eq.s32.totalorder %s13, 0
    %p97 = por %p95, %p96
    %p98 = scmp.ne.s32.totalorder %s84, %s85
    %p99 = scmp.eq.s32.totalorder %s14, 1
    %p100 = por %p98, %p99
    %p102 = scmp.ne.s32.totalorder %s85, %s101
    %p103 = scmp.eq.s32.totalorder %s14, 0
    %p104 = por %p102, %p103
    %p105 = scmp.le.s32.totalorder 1, %s8
    %p106 = scmp.lt.s32.totalorder %s8, 3
    %p107 = pnand %p105, %p106
    %p108 = pneg %p107
    // Predicated region
    $region9: #{upsample2x_conv1x1.3} parent=5 // pred_check
      _
    $region10: #{upsample2x_conv1x1.3} parent=5 // pred_check_branch
      %110 = sbr.rel (%p107) target = $region12
    $region11: #{upsample2x_conv1x1.3} parent=5 // pred_region
      %s111 = ssub.s32 %s8, 1
      // Predicated region
      $region13: #{upsample2x_conv1x1.3} parent=11 // pred_check
        %p112 = pneg %p69
      $region14: #{upsample2x_conv1x1.3} parent=11 // pred_check_branch
        %114 = sbr.rel (%p112) target = $region16
      $region15: #{upsample2x_conv1x1.3} parent=11 // pred_region
        _
      $region16: #{upsample2x_conv1x1.3} parent=11 // pred_fallthru
        _
    $region12: #{upsample2x_conv1x1.3} parent=5 // pred_fallthru
      _
    %p115 = scmp.lt.s32.totalorder %s8, 2
    // Predicated region
    $region17: #{upsample2x_conv1x1.3} parent=5 // pred_check
      %p116 = pneg %p115
    $region18: #{upsample2x_conv1x1.3} parent=5 // pred_check_branch
      %118 = sbr.rel (%p116) target = $region20
    $region19: #{upsample2x_conv1x1.3} parent=5 // pred_region
      // Predicated region
      $region21: #{upsample2x_conv1x1.3} parent=19 // pred_check
        %p119 = pneg %p42
      $region22: #{upsample2x_conv1x1.3} parent=19 // pred_check_branch
        %121 = sbr.rel (%p119) target = $region24
      $region23: #{upsample2x_conv1x1.3} parent=19 // pred_region
        %s122 = smul.u32 2, %s16
        %p123 = scmp.lt.s32.totalorder %s15, 1
        %s124 = scalar_select %p123, %s15, 1
        %p125 = scmp.lt.s32.totalorder %s122, 1
        %s126 = scalar_select %p125, %s122, 1
        %s127 = smul.addr %s126, 2
        %s128 = smul.addr %s124, 4
        %s129 = sadd.s32 %s127, %s128
        %s130 = smul.addr %s129, 4
        %s131 = scalar_lea.vmem %s0, %s130
        %s132 = smul.u32 2, %s16
      $region24: #{upsample2x_conv1x1.3} parent=19 // pred_fallthru
        _
    $region20: #{upsample2x_conv1x1.3} parent=5 // pred_fallthru
      _
    %p133 = scmp.le.s32.totalorder 1, %s8
    %p134 = scmp.lt.s32.totalorder %s8, 3
    %p135 = pnand %p133, %p134
    %p136 = pneg %p135
    // Predicated region
    $region25: #{upsample2x_conv1x1.3} parent=5 // pred_check
      _
    $region26: #{upsample2x_conv1x1.3} parent=5 // pred_check_branch
      %138 = sbr.rel (%p135) target = $region28
    $region27: #{upsample2x_conv1x1.3} parent=5 // pred_region
      %s139 = ssub.s32 %s8, 1
      %s140 = smul.u32 2, %s18
      %p141 = scmp.lt.s32.totalorder %s17, 1
      %s142 = scalar_select %p141, %s17, 1
      %p143 = scmp.lt.s32.totalorder %s140, 1
      %s144 = scalar_select %p143, %s140, 1
      %s145 = smul.addr %s144, 2
      %s146 = smul.addr %s142, 4
      %s147 = sadd.s32 %s145, %s146
      %s148 = smul.addr %s147, 4
      %s149 = scalar_lea.vmem %s0, %s148
      %p150 = pneg %p48
      %p151 = pneg %p45
      %p152 = pneg %p69
      %p153 = pneg %p66
      %p154 = pneg %p97
      %p155 = pneg %p94
      %s156 = smul.u32 2, %s18
      %p157 = scmp.lt.s32.totalorder %s17, 1
      %s158 = scalar_select %p157, %s17, 1
      %p159 = scmp.lt.s32.totalorder %s156, 1
      %s160 = scalar_select %p159, %s156, 1
      %s161 = smul.addr %s160, 2
      %s162 = smul.addr %s158, 4
      %s163 = sadd.s32 %s161, %s162
      %s164 = smul.addr %s163, 4
      %s165 = scalar_lea.vmem %s2, %s164
      %s166 = smul.u32 2, %s18
      %p167 = scmp.lt.s32.totalorder %s17, 1
      %s168 = scalar_select %p167, %s17, 1
      %p169 = scmp.lt.s32.totalorder %s166, 1
      %s170 = scalar_select %p169, %s166, 1
      %s171 = smul.addr %s170, 2
      %s172 = smul.addr %s168, 4
      %s173 = sadd.s32 %s171, %s172
      %s174 = smul.addr %s173, 4
      %s175 = scalar_lea.vmem %s0, %s174
      %s176 = smul.u32 2, %s18
      %s177 = smul.u32 2, %s18
      %p178 = scmp.lt.s32.totalorder %s17, 1
      %s179 = scalar_select %p178, %s17, 1
      %p180 = scmp.lt.s32.totalorder %s177, 1
      %s181 = scalar_select %p180, %s177, 1
      %s182 = smul.addr %s181, 2
      %s183 = smul.addr %s179, 4
      %s184 = sadd.s32 %s182, %s183
      %s185 = smul.addr %s184, 4
      %s186 = scalar_lea.vmem %s2, %s185
      %s187 = smul.u32 2, %s18
      %v189 = vld [vmem:[%s175] sm:$0xf]
      %v190 = vld [vmem:[%s175 + $0x4] sm:$0xf]
      %v191 = vld [vmem:[%s175 + $0x8] sm:$0xf]
      %v192 = vld [vmem:[%s175 + $0xc] sm:$0xf]
      %v193 = vld [vmem:[%s1] sm:$0xf]
      %v194 = vld [vmem:[%s1 + $0x4] sm:$0xf]
      %v199 = vunpack.c.l.b16 %v189
      %v200 = vunpack.c.l.b16 %v190
      %v201 = vunpack.c.l.b16 %v191
      %v202 = vunpack.c.l.b16 %v192
      %v203 = vpack.c.b16 %v200, %v199
      %v204 = vpack.c.b16 %v202, %v201
      %v207 = vunpack.c.l.b16 %v193
      %v208 = vunpack.c.l.b16 %v194
      %v209 = vpack.c.b16 %v208, %v207
      %vm211 = vcmask 130048
      %v213 = vsel %vm211, %v203, 0
      %v216 = vsel %vm211, %v204, 0
      %218 = vmatprep.subr.bf16.mxu0 0
      %219 = vmatpush1.bf16.msra.mxu0 %v209
      %220 = vmatprep.subr.bf16.mxu0 0
      %221 = vmatpush1.bf16.msra.mxu0 0
      %222 = vmatprep.subr.bf16.mxu0 0
      %223 = vmatpush1.bf16.msra.mxu0 0
      %224 = vmatprep.subr.bf16.mxu0 0
      %225 = vmatpush1.bf16.msra.mxu0 0
      %226 = vmatprep.subr.bf16.mxu0 0
      %227 = vmatpush1.bf16.msra.mxu0 0
      %228 = vmatprep.subr.bf16.mxu0 0
      %229 = vmatpush1.bf16.msra.mxu0 0
      %230 = vmatprep.subr.bf16.mxu0 0
      %231 = vmatpush1.bf16.msra.mxu0 0
      %232 = vmatprep.subr.bf16.mxu0 0
      %233 = vmatpush1.bf16.msra.mxu0 0
      %234 = vmatprep.subr.bf16.mxu0 0
      %235 = vmatpush1.bf16.msra.mxu0 0
      %236 = vmatprep.subr.bf16.mxu0 0
      %237 = vmatpush1.bf16.msra.mxu0 0
      %238 = vmatprep.subr.bf16.mxu0 0
      %239 = vmatpush1.bf16.msra.mxu0 0
      %240 = vmatprep.subr.bf16.mxu0 0
      %241 = vmatpush1.bf16.msra.mxu0 0
      %242 = vmatprep.subr.bf16.mxu0 0
      %243 = vmatpush1.bf16.msra.mxu0 0
      %244 = vmatprep.subr.bf16.mxu0 0
      %245 = vmatpush1.bf16.msra.mxu0 0
      %246 = vmatprep.subr.bf16.mxu0 0
      %247 = vmatpush1.bf16.msra.mxu0 0
      %248 = vmatprep.subr.bf16.mxu0 0
      %249 = vmatpush1.bf16.msra.mxu0 0
      %250 = vmatprep.mubr.bf16.mxu0 0
      %251 = vmatmul.mubr.bf16.gmra.mrb[0].mxu0 %v213
      %v252 = vpop.f32.mrb[0].mxu0
      %v253 = vadd.f32 0.0, %v252
      %v254 = vpop.f32.mrb[0].mxu0
      %v255 = vpop.f32.mrb[0].mxu0
      %v256 = vadd.f32 0.0, %v255
      %v257 = vpop.f32.mrb[0].mxu0
      %258 = vmatprep.mubr.bf16.mxu0 0
      %259 = vmatmul.mubr.bf16.gmra.mrb[0].mxu0 %v216
      %v260 = vpop.f32.mrb[0].mxu0
      %v261 = vadd.f32 0.0, %v260
      %v262 = vpop.f32.mrb[0].mxu0
      %v263 = vpop.f32.mrb[0].mxu0
      %v264 = vadd.f32 0.0, %v263
      %v265 = vpop.f32.mrb[0].mxu0
      %266 = vdwg.mxu0
      %271 = vrot.lane.b32.xlu0 %v253, 32
      %v272 = vpop.permute.xlu0 %271
      %273 = vrot.lane.b32.xlu0 %v256, 32
      %v274 = vpop.permute.xlu0 %273
      %275 = vrot.lane.b32.xlu0 %v261, 32
      %v276 = vpop.permute.xlu0 %275
      %277 = vrot.lane.b32.xlu0 %v264, 32
      %v278 = vpop.permute.xlu0 %277
      %vm283 = vcmask 261120
      %v284 = vsel %vm283, %v253, %v272
      %v285 = vsel %vm283, %v256, %v274
      %v286 = vsel %vm283, %v261, %v276
      %v287 = vsel %vm283, %v264, %v278
      %v288 = vpack.c.bf16 %v285, %v284
      %v289 = vpack.c.bf16 %v287, %v286
      %v292 = vunpack.c.l.b16 %v288
      %v293 = vunpack.c.h.b16 %v288
      %v294 = vunpack.c.l.b16 %v289
      %v295 = vunpack.c.h.b16 %v289
      %v296 = vpack.c.b16 %v292, %v292
      %v297 = vpack.c.b16 %v293, %v293
      %v298 = vpack.c.b16 %v294, %v294
      %v299 = vpack.c.b16 %v295, %v295
      %vm304 = vcmask 519168
      %305 = vst.msk [vmem:[%s186] sm:$0xf] %vm304, %v296
      %306 = vst.msk [vmem:[%s186 + $0x4] sm:$0xf] %vm304, %v297
      %307 = vst.msk [vmem:[%s186 + $0x8] sm:$0xf] %vm304, %v298
      %308 = vst.msk [vmem:[%s186 + $0xc] sm:$0xf] %vm304, %v299
      %s309 = smul.u32 2, %s18
      %p310 = scmp.lt.s32.totalorder %s17, 1
      %s311 = scalar_select %p310, %s17, 1
      %p312 = scmp.lt.s32.totalorder %s309, 1
      %s313 = scalar_select %p312, %s309, 1
      %s314 = smul.addr %s313, 2
      %s315 = smul.addr %s311, 4
      %s316 = sadd.s32 %s314, %s315
      %s317 = smul.addr %s316, 4
      %s318 = scalar_lea.vmem %s2, %s317
      // Predicated region
      $region29: #{upsample2x_conv1x1.3} parent=27 // pred_check
        %p319 = pneg %p94
      $region30: #{upsample2x_conv1x1.3} parent=27 // pred_check_branch
        %321 = sbr.rel (%p319) target = $region32
      $region31: #{upsample2x_conv1x1.3} parent=27 // pred_region
        %s322 = smul.u32 2, %s18
      $region32: #{upsample2x_conv1x1.3} parent=27 // pred_fallthru
        _
    $region28: #{upsample2x_conv1x1.3} parent=5 // pred_fallthru
      _
    %p323 = scmp.le.s32.totalorder 2, %s8
    // Predicated region
    $region33: #{upsample2x_conv1x1.3} parent=5 // pred_check
      %p324 = pneg %p323
    $region34: #{upsample2x_conv1x1.3} parent=5 // pred_check_branch
      %326 = sbr.rel (%p324) target = $region36
    $region35: #{upsample2x_conv1x1.3} parent=5 // pred_region
      %s327 = ssub.s32 %s8, 2
      // Predicated region
      $region37: #{upsample2x_conv1x1.3} parent=35 // pred_check
        %p328 = pneg %p100
      $region38: #{upsample2x_conv1x1.3} parent=35 // pred_check_branch
        %330 = sbr.rel (%p328) target = $region40
      $region39: #{upsample2x_conv1x1.3} parent=35 // pred_region
        %s331 = smul.u32 2, %s20
        %p332 = scmp.lt.s32.totalorder %s19, 1
        %s333 = scalar_select %p332, %s19, 1
        %p334 = scmp.lt.s32.totalorder %s331, 1
        %s335 = scalar_select %p334, %s331, 1
        %s336 = smul.addr %s335, 2
        %s337 = smul.addr %s333, 4
        %s338 = sadd.s32 %s336, %s337
        %s339 = smul.addr %s338, 4
        %s340 = scalar_lea.vmem %s2, %s339
      $region40: #{upsample2x_conv1x1.3} parent=35 // pred_fallthru
        _
    $region36: #{upsample2x_conv1x1.3} parent=5 // pred_fallthru
      _
  $region6: #{upsample2x_conv1x1.3} parent=0 // loop_footer
    %s12 = sadd.s32 1, %s8
  $region7: #{upsample2x_conv1x1.3} parent=0 // loop_footer_branch
    %7 = sbr.rel target = $region3
  $region8: #{upsample2x_conv1x1.3} parent=0 // loop_exit
    _

</llo_original>
